<compile_context>
chip_gen: v6e
topology: v6e:2x2x1
jax: 0.10.0
libtpu: 0.0.40
codegen_flags: <defaults>
</compile_context>

<pallas_src>
import jax
import jax.numpy as jnp
from jax.experimental import pallas as pl
from jax.experimental.pallas import tpu as pltpu


def _round_up(x, m):
    return (x + m - 1) // m * m


def _bprmf_kernel(uid_ref, iid_ref, ut_ref, it_ref, o_ref):
    # uid_ref / iid_ref : (1, BT)       int32 ids for this batch tile.
    # ut_ref            : (D_pad, NuP)  f32 full user table, transposed + padded.
    # it_ref            : (D_pad, NiP)  f32 full item table, transposed + padded.
    # o_ref             : (1, BT)       f32 lane-dense score slab for this tile.
    nu = ut_ref.shape[1]
    ni = it_ref.shape[1]
    bt = uid_ref.shape[1]

    uid = uid_ref[...]                                   # (1, BT) int32
    iid = iid_ref[...]                                   # (1, BT) int32

    # One-hot gather matrices on the VPU: oh[n, b] = (n == id[b]).
    u_oh = (jax.lax.broadcasted_iota(jnp.int32, (nu, bt), 0) == uid
            ).astype(ut_ref.dtype)                       # (NuP, BT)
    i_oh = (jax.lax.broadcasted_iota(jnp.int32, (ni, bt), 0) == iid
            ).astype(it_ref.dtype)                       # (NiP, BT)

    # Gather via MXU: [D, N] @ [N, BT] -> [D, BT]  (batch on lanes).
    u_t = jnp.dot(ut_ref[...], u_oh, preferred_element_type=jnp.float32)  # (D, BT)
    i_t = jnp.dot(it_ref[...], i_oh, preferred_element_type=jnp.float32)  # (D, BT)

    # Per-column dot product: VPU multiply + sublane (XLU) reduce over D.
    o_ref[...] = jnp.sum(u_t * i_t, axis=0, keepdims=True)               # (1, BT)


def bprmf_forward(user_table, item_table, user_ids, item_ids, *, block_b=512):
    """Pallas implementation of BPRMF.forward: scores = sum(U[uid] * I[iid], -1)."""
    B = user_ids.shape[0]
    n_users, D = user_table.shape
    n_items, D_i = item_table.shape
    assert D == D_i, "user/item embedding dims must match"

    # Lane-aligned batch tile, adapted to the batch (never over-pads a tiny batch
    # beyond one 128-lane vreg row).
    BT = min(block_b, max(128, _round_up(B, 128)))
    num_tiles = pl.cdiv(B, BT)
    B_pad = num_tiles * BT

    # Pad ids to a multiple of BT (pad entries index row 0; results are sliced off).
    uid = jnp.zeros((1, B_pad), jnp.int32).at[0, :B].set(user_ids.astype(jnp.int32))
    iid = jnp.zeros((1, B_pad), jnp.int32).at[0, :B].set(item_ids.astype(jnp.int32))

    # Layout plumbing only: transpose tables so the gathered slab is [D, BT] (batch on
    # the lane axis, reduction over sublanes) and zero-pad to (mult-of-8, mult-of-128)
    # so every vreg tile is full. Padded rows/cols are never selected (ids < N) and
    # padded D sublanes contribute zero to the reduce.
    D_pad = _round_up(D, 8)
    nu_pad = _round_up(n_users, 128)
    ni_pad = _round_up(n_items, 128)
    ut = jnp.zeros((D_pad, nu_pad), jnp.float32).at[:D, :n_users].set(
        user_table.astype(jnp.float32).T)
    it = jnp.zeros((D_pad, ni_pad), jnp.float32).at[:D, :n_items].set(
        item_table.astype(jnp.float32).T)

    out = pl.pallas_call(
        _bprmf_kernel,
        out_shape=jax.ShapeDtypeStruct((1, B_pad), jnp.float32),
        grid=(num_tiles,),
        in_specs=[
            pl.BlockSpec((1, BT), lambda t: (0, t)),         # user ids tile
            pl.BlockSpec((1, BT), lambda t: (0, t)),         # item ids tile
            pl.BlockSpec((D_pad, nu_pad), lambda t: (0, 0)),  # whole user table (VMEM)
            pl.BlockSpec((D_pad, ni_pad), lambda t: (0, 0)),  # whole item table (VMEM)
        ],
        out_specs=pl.BlockSpec((1, BT), lambda t: (0, t)),
        compiler_params=pltpu.CompilerParams(
            dimension_semantics=("parallel",)),
    )(uid, iid, ut, it)

    return out[0, :B]


if __name__ == "__main__":
    # Deterministic synthetic parameters (matches nn.init.normal_(std=0.01)).
    n_users, n_items, hidden_dims = 64, 100, 32
    batch = 8

    key = jax.random.PRNGKey(0)
    k_u, k_i, k_uid, k_iid = jax.random.split(key, 4)

    user_table = (0.01 * jax.random.normal(k_u, (n_users, hidden_dims))).astype(jnp.float32)
    item_table = (0.01 * jax.random.normal(k_i, (n_items, hidden_dims))).astype(jnp.float32)

    user_ids = jax.random.randint(k_uid, (batch,), 0, n_users, dtype=jnp.int32)
    item_ids = jax.random.randint(k_iid, (batch,), 0, n_items, dtype=jnp.int32)

    scores = bprmf_forward(user_table, item_table, user_ids, item_ids)
    scores = jax.block_until_ready(scores)

    # Pure-JAX reference (tolerance allows for MXU f32 rounding in the one-hot gather;
    # a wrong gather would be off by ~1e-3).
    ref = jnp.sum(user_table[user_ids] * item_table[item_ids], axis=-1)
    assert scores.shape == (batch,)
    assert jnp.allclose(scores, ref, atol=2e-5, rtol=1e-2), (scores, ref)

    print("KERNEL_OK")
</pallas_src>

<mosaic_0001>
module attributes {stable_mosaic.version = 11 : i64} {
  func.func @_bprmf_kernel(%arg0: i32, %arg1: memref<1x128xi32, #tpu.memory_space<vmem>>, %arg2: memref<1x128xi32, #tpu.memory_space<vmem>>, %arg3: memref<32x128xf32, #tpu.memory_space<vmem>>, %arg4: memref<32x128xf32, #tpu.memory_space<vmem>>, %arg5: memref<1x128xf32, #tpu.memory_space<vmem>>) attributes {dimension_semantics = [#tpu.dimension_semantics<parallel>], iteration_bounds = array<i64: 1>, scalar_prefetch = 0 : i64, scratch_operands = 0 : i64, tpu.core_type = #tpu.core_type<tc>, window_params = [{transform_indices = @transform_0, window_bounds = array<i64: 1, 128>}, {transform_indices = @transform_1, window_bounds = array<i64: 1, 128>}, {pipeline_mode = #tpu.pipeline_mode<synchronous>, transform_indices = @transform_2, window_bounds = array<i64: 32, 128>}, {pipeline_mode = #tpu.pipeline_mode<synchronous>, transform_indices = @transform_3, window_bounds = array<i64: 32, 128>}, {transform_indices = @transform_4, window_bounds = array<i64: 1, 128>}]} {
    %c0 = arith.constant 0 : index
    %c0_0 = arith.constant 0 : index
    %0 = vector.load %arg1[%c0, %c0_0] : memref<1x128xi32, #tpu.memory_space<vmem>>, vector<1x128xi32>
    %c0_1 = arith.constant 0 : index
    %c0_2 = arith.constant 0 : index
    %1 = vector.load %arg2[%c0_1, %c0_2] : memref<1x128xi32, #tpu.memory_space<vmem>>, vector<1x128xi32>
    %2 = tpu.iota {dimensions = array<i32: 0>} : vector<128x128xi32>
    %3 = vector.broadcast %0 : vector<1x128xi32> to vector<128x128xi32>
    %4 = arith.cmpi eq, %2, %3 : vector<128x128xi32>
    %5 = arith.extui %4 : vector<128x128xi1> to vector<128x128xi32>
    %6 = arith.sitofp %5 : vector<128x128xi32> to vector<128x128xf32>
    %7 = tpu.iota {dimensions = array<i32: 0>} : vector<128x128xi32>
    %8 = vector.broadcast %1 : vector<1x128xi32> to vector<128x128xi32>
    %9 = arith.cmpi eq, %7, %8 : vector<128x128xi32>
    %10 = arith.extui %9 : vector<128x128xi1> to vector<128x128xi32>
    %11 = arith.sitofp %10 : vector<128x128xi32> to vector<128x128xf32>
    %c0_3 = arith.constant 0 : index
    %c0_4 = arith.constant 0 : index
    %12 = vector.load %arg3[%c0_3, %c0_4] : memref<32x128xf32, #tpu.memory_space<vmem>>, vector<32x128xf32>
    %cst = arith.constant dense<0.000000e+00> : vector<32x128xf32>
    %13 = tpu.matmul %12, %6, %cst {dimension_numbers = #tpu.dot_dimension_numbers<[1], [0], [0], [1], [0, 0, 1, 1], [], []>} : vector<32x128xf32>, vector<128x128xf32>, vector<32x128xf32> -> vector<32x128xf32>
    %c0_5 = arith.constant 0 : index
    %c0_6 = arith.constant 0 : index
    %14 = vector.load %arg4[%c0_5, %c0_6] : memref<32x128xf32, #tpu.memory_space<vmem>>, vector<32x128xf32>
    %cst_7 = arith.constant dense<0.000000e+00> : vector<32x128xf32>
    %15 = tpu.matmul %14, %11, %cst_7 {dimension_numbers = #tpu.dot_dimension_numbers<[1], [0], [0], [1], [0, 0, 1, 1], [], []>} : vector<32x128xf32>, vector<128x128xf32>, vector<32x128xf32> -> vector<32x128xf32>
    %16 = arith.mulf %13, %15 : vector<32x128xf32>
    %cst_8 = arith.constant dense<0.000000e+00> : vector<128xf32>
    %17 = vector.multi_reduction <add>, %16, %cst_8 [0] : vector<32x128xf32> to vector<128xf32>
    %18 = vector.shape_cast %17 : vector<128xf32> to vector<1x128xf32>
    %c0_9 = arith.constant 0 : index
    %c0_10 = arith.constant 0 : index
    %19 = vector.load %arg5[%c0_9, %c0_10] : memref<1x128xf32, #tpu.memory_space<vmem>>, vector<1x128xf32>
    tpu.vector_store %arg5[%c0_9, %c0_10], %18 {strides = array<i32>} : memref<1x128xf32, #tpu.memory_space<vmem>>, vector<1x128xf32>,
    return
  }
  func.func @transform_0(%arg0: i32) -> (i32, i32) {
    %c0_i32 = arith.constant 0 : i32
    %c0_i32_0 = arith.constant 0 : i32
    return %c0_i32, %arg0 : i32, i32
  }
  func.func @transform_1(%arg0: i32) -> (i32, i32) {
    %c0_i32 = arith.constant 0 : i32
    %c0_i32_0 = arith.constant 0 : i32
    return %c0_i32, %arg0 : i32, i32
  }
  func.func @transform_2(%arg0: i32) -> (i32, i32) {
    %c0_i32 = arith.constant 0 : i32
    %c0_i32_0 = arith.constant 0 : i32
    %c0_i32_1 = arith.constant 0 : i32
    return %c0_i32, %c0_i32_0 : i32, i32
  }
  func.func @transform_3(%arg0: i32) -> (i32, i32) {
    %c0_i32 = arith.constant 0 : i32
    %c0_i32_0 = arith.constant 0 : i32
    %c0_i32_1 = arith.constant 0 : i32
    return %c0_i32, %c0_i32_0 : i32, i32
  }
  func.func @transform_4(%arg0: i32) -> (i32, i32) {
    %c0_i32 = arith.constant 0 : i32
    %c0_i32_0 = arith.constant 0 : i32
    return %c0_i32, %arg0 : i32, i32
  }
}

</mosaic_0001>

<llo_original>
// kernel: tpu_custom_call.1
$region0: #{tpu_custom_call.1}
  #allocation0 [shape = 'u32[]', space=smem, size = 0x4, offset = 0x4, fixed_abs, tag = 'smem constant byte address 0x4 - core index']
  #allocation1 [shape = 'u32[144,128]{1,0:T(1,128)}', space=vmem, size = 0x12000, scoped, tag = 'internal scratch']
  %s0 = inlined_call_operand.hbm [shape: s32[1,128], index: 0, kind: input, shape index: {}]
  %s1 = inlined_call_operand.vmem [shape: s32[1,128], index: 1, kind: input, shape index: {}]
  %s2 = inlined_call_operand.hbm [shape: f32[32,128], index: 2, kind: input, shape index: {}]
  %s3 = inlined_call_operand.hbm [shape: f32[32,128], index: 3, kind: input, shape index: {}]
  %s4 = inlined_call_operand.hbm [shape: f32[1,128], index: 4, kind: output, shape index: {}]
  %s5 = sld [smem:[#allocation0]]
  $region38: #{tpu_custom_call.1} parent=0
    _
  %s7 = ssub.s32 1, %s5
  %s8 = scalar_select 0, %s7, %s5
  $region1: #{tpu_custom_call.1} parent=0
    #allocation2 [shape = 'u8[512]{0}', space=vmem, size = 0x400, scoped, tag = 'input window, operand 0, single buffered']
    #allocation3 [shape = 's32[1]{0}', space=sflag, size = 0x4, scoped, tag = 'scoped memory for tpu_custom_call.1']
    #allocation4 [shape = 's32[1]{0}', space=sflag, size = 0x4, scoped, tag = 'scoped memory for tpu_custom_call.1']
    #allocation5 [shape = 'u8[16384]{0}', space=vmem, size = 0x4000, scoped, tag = 'input window, operand 2, single buffered']
    #allocation6 [shape = 's32[1]{0}', space=sflag, size = 0x4, scoped, tag = 'scoped memory for tpu_custom_call.1']
    #allocation7 [shape = 'u8[16384]{0}', space=vmem, size = 0x4000, scoped, tag = 'input window, operand 3, single buffered']
    #allocation8 [shape = 'u8[512]{0}', space=vmem, size = 0x400, scoped, tag = 'output window, operand 0, single buffered']
    %9 = vsyncpa [#allocation3], 0
    %10 = vsyncpa [#allocation6], 0
    %11 = vsyncpa [#allocation4], 0
    // Predicated region
    $region2: #{tpu_custom_call.1} parent=1 // pred_check
      _
    $region3: #{tpu_custom_call.1} parent=1 // pred_check_branch
      %13 = sbr.rel (0) target = $region5
    $region4: #{tpu_custom_call.1} parent=1 // pred_region
      %s15 = ssub.s32 16, 16
      %16 = vsyncadd [#allocation3], %s15
      %s18 = sshll.u32 [#allocation2], 4
      %s19 = int_to_ptr.vmem [resolvable:$true] %s18
      %21 = dma.hbm_to_vmem [thread:$0]  %s0, 16, %s19, [#allocation3]
    $region5: #{tpu_custom_call.1} parent=1 // pred_fallthru
      _
    // Predicated region
    $region6: #{tpu_custom_call.1} parent=1 // pred_check
      _
    $region7: #{tpu_custom_call.1} parent=1 // pred_check_branch
      %23 = sbr.rel (0) target = $region9
    $region8: #{tpu_custom_call.1} parent=1 // pred_region
      _
    $region9: #{tpu_custom_call.1} parent=1 // pred_fallthru
      _
    // Predicated region
    $region10: #{tpu_custom_call.1} parent=1 // pred_check
      _
    $region11: #{tpu_custom_call.1} parent=1 // pred_check_branch
      %25 = sbr.rel (0) target = $region13
    $region12: #{tpu_custom_call.1} parent=1 // pred_region
      %s27 = ssub.s32 512, 512
      %28 = vsyncadd [#allocation6], %s27
      %s29 = sshll.u32 [#allocation5], 4
      %s30 = int_to_ptr.vmem [resolvable:$true] %s29
      %35 = dma.hbm_to_vmem [thread:$0]  %s2, 512, %s30, [#allocation6], 128, 128, 8
    $region13: #{tpu_custom_call.1} parent=1 // pred_fallthru
      _
    // Predicated region
    $region14: #{tpu_custom_call.1} parent=1 // pred_check
      _
    $region15: #{tpu_custom_call.1} parent=1 // pred_check_branch
      %37 = sbr.rel (0) target = $region17
    $region16: #{tpu_custom_call.1} parent=1 // pred_region
      %s39 = ssub.s32 512, 512
      %40 = vsyncadd [#allocation6], %s39
      %s41 = sshll.u32 [#allocation7], 4
      %s42 = int_to_ptr.vmem [resolvable:$true] %s41
      %47 = dma.hbm_to_vmem [thread:$0]  %s3, 512, %s42, [#allocation6], 128, 128, 8
    $region17: #{tpu_custom_call.1} parent=1 // pred_fallthru
      _
    // Predicated region
    $region18: #{tpu_custom_call.1} parent=1 // pred_check
      _
    $region19: #{tpu_custom_call.1} parent=1 // pred_check_branch
      %49 = sbr.rel (0) target = $region21
    $region20: #{tpu_custom_call.1} parent=1 // pred_region
      %50 = dma.done [#allocation3], 16
    $region21: #{tpu_custom_call.1} parent=1 // pred_fallthru
      _
    // Predicated region
    $region22: #{tpu_custom_call.1} parent=1 // pred_check
      _
    $region23: #{tpu_custom_call.1} parent=1 // pred_check_branch
      %52 = sbr.rel (0) target = $region25
    $region24: #{tpu_custom_call.1} parent=1 // pred_region
      %53 = dma.done [#allocation6], 512
    $region25: #{tpu_custom_call.1} parent=1 // pred_fallthru
      _
    // Predicated region
    $region26: #{tpu_custom_call.1} parent=1 // pred_check
      _
    $region27: #{tpu_custom_call.1} parent=1 // pred_check_branch
      %55 = sbr.rel (0) target = $region29
    $region28: #{tpu_custom_call.1} parent=1 // pred_region
      %56 = dma.done [#allocation6], 512
    $region29: #{tpu_custom_call.1} parent=1 // pred_fallthru
      _
    %v57 = vld [vmem:[#allocation2] sm:$0x1]
    %v58 = vld [vmem:[%s1] sm:$0x1]
    %v59 = vlaneseq
    %v60 = vshrl.u32 %v59, 7
    %v61 = vadd.s32 %v60, 8
    %v62 = vadd.s32 %v60, 16
    %v63 = vadd.s32 %v60, 24
    %v64 = vadd.s32 %v60, 32
    %v65 = vadd.s32 %v60, 40
    %v66 = vadd.s32 %v60, 48
    %v67 = vadd.s32 %v60, 56
    %v68 = vadd.s32 %v60, 64
    %v69 = vadd.s32 %v60, 72
    %v70 = vadd.s32 %v60, 80
    %v71 = vadd.s32 %v60, 88
    %v72 = vadd.s32 %v60, 96
    %v73 = vadd.s32 %v60, 104
    %v74 = vadd.s32 %v60, 112
    %v75 = vadd.s32 %v60, 120
    %v76 = vlaneseq
    %v77 = vshrl.u32 %v76, 7
    %v78 = vsub.s32 0, %v77
    %v79 = vrot.slane %v57, %v78
    %vm80 = vcmp.eq.s32.totalorder %v60, %v79
    %vm81 = vcmp.eq.s32.totalorder %v61, %v79
    %vm82 = vcmp.eq.s32.totalorder %v62, %v79
    %vm83 = vcmp.eq.s32.totalorder %v63, %v79
    %vm84 = vcmp.eq.s32.totalorder %v64, %v79
    %vm85 = vcmp.eq.s32.totalorder %v65, %v79
    %vm86 = vcmp.eq.s32.totalorder %v66, %v79
    %vm87 = vcmp.eq.s32.totalorder %v67, %v79
    %vm88 = vcmp.eq.s32.totalorder %v68, %v79
    %vm89 = vcmp.eq.s32.totalorder %v69, %v79
    %vm90 = vcmp.eq.s32.totalorder %v70, %v79
    %vm91 = vcmp.eq.s32.totalorder %v71, %v79
    %vm92 = vcmp.eq.s32.totalorder %v72, %v79
    %vm93 = vcmp.eq.s32.totalorder %v73, %v79
    %vm94 = vcmp.eq.s32.totalorder %v74, %v79
    %vm95 = vcmp.eq.s32.totalorder %v75, %v79
    %v96 = vsel %vm80, 1, 0
    %v97 = vsel %vm81, 1, 0
    %v98 = vsel %vm82, 1, 0
    %v99 = vsel %vm83, 1, 0
    %v100 = vsel %vm84, 1, 0
    %v101 = vsel %vm85, 1, 0
    %v102 = vsel %vm86, 1, 0
    %v103 = vsel %vm87, 1, 0
    %v104 = vsel %vm88, 1, 0
    %v105 = vsel %vm89, 1, 0
    %v106 = vsel %vm90, 1, 0
    %v107 = vsel %vm91, 1, 0
    %v108 = vsel %vm92, 1, 0
    %v109 = vsel %vm93, 1, 0
    %v110 = vsel %vm94, 1, 0
    %v111 = vsel %vm95, 1, 0
    %v112 = vcvt.s32.f32 %v96
    %v113 = vcvt.s32.f32 %v97
    %v114 = vcvt.s32.f32 %v98
    %v115 = vcvt.s32.f32 %v99
    %v116 = vcvt.s32.f32 %v100
    %v117 = vcvt.s32.f32 %v101
    %v118 = vcvt.s32.f32 %v102
    %v119 = vcvt.s32.f32 %v103
    %v120 = vcvt.s32.f32 %v104
    %v121 = vcvt.s32.f32 %v105
    %v122 = vcvt.s32.f32 %v106
    %v123 = vcvt.s32.f32 %v107
    %v124 = vcvt.s32.f32 %v108
    %v125 = vcvt.s32.f32 %v109
    %v126 = vcvt.s32.f32 %v110
    %v127 = vcvt.s32.f32 %v111
    %v128 = vlaneseq
    %v129 = vshrl.u32 %v128, 7
    %v130 = vsub.s32 0, %v129
    %v131 = vrot.slane %v58, %v130
    %vm132 = vcmp.eq.s32.totalorder %v60, %v131
    %vm133 = vcmp.eq.s32.totalorder %v61, %v131
    %vm134 = vcmp.eq.s32.totalorder %v62, %v131
    %vm135 = vcmp.eq.s32.totalorder %v63, %v131
    %vm136 = vcmp.eq.s32.totalorder %v64, %v131
    %vm137 = vcmp.eq.s32.totalorder %v65, %v131
    %vm138 = vcmp.eq.s32.totalorder %v66, %v131
    %vm139 = vcmp.eq.s32.totalorder %v67, %v131
    %vm140 = vcmp.eq.s32.totalorder %v68, %v131
    %vm141 = vcmp.eq.s32.totalorder %v69, %v131
    %vm142 = vcmp.eq.s32.totalorder %v70, %v131
    %vm143 = vcmp.eq.s32.totalorder %v71, %v131
    %vm144 = vcmp.eq.s32.totalorder %v72, %v131
    %vm145 = vcmp.eq.s32.totalorder %v73, %v131
    %vm146 = vcmp.eq.s32.totalorder %v74, %v131
    %vm147 = vcmp.eq.s32.totalorder %v75, %v131
    %v148 = vsel %vm132, 1, 0
    %v149 = vsel %vm133, 1, 0
    %v150 = vsel %vm134, 1, 0
    %v151 = vsel %vm135, 1, 0
    %v152 = vsel %vm136, 1, 0
    %v153 = vsel %vm137, 1, 0
    %v154 = vsel %vm138, 1, 0
    %v155 = vsel %vm139, 1, 0
    %v156 = vsel %vm140, 1, 0
    %v157 = vsel %vm141, 1, 0
    %v158 = vsel %vm142, 1, 0
    %v159 = vsel %vm143, 1, 0
    %v160 = vsel %vm144, 1, 0
    %v161 = vsel %vm145, 1, 0
    %v162 = vsel %vm146, 1, 0
    %v163 = vsel %vm147, 1, 0
    %v164 = vcvt.s32.f32 %v148
    %v165 = vcvt.s32.f32 %v149
    %v166 = vcvt.s32.f32 %v150
    %v167 = vcvt.s32.f32 %v151
    %v168 = vcvt.s32.f32 %v152
    %v169 = vcvt.s32.f32 %v153
    %v170 = vcvt.s32.f32 %v154
    %v171 = vcvt.s32.f32 %v155
    %v172 = vcvt.s32.f32 %v156
    %v173 = vcvt.s32.f32 %v157
    %v174 = vcvt.s32.f32 %v158
    %v175 = vcvt.s32.f32 %v159
    %v176 = vcvt.s32.f32 %v160
    %v177 = vcvt.s32.f32 %v161
    %v178 = vcvt.s32.f32 %v162
    %v179 = vcvt.s32.f32 %v163
    %v180 = vld [vmem:[#allocation5] sm:$0xff]
    %v181 = vld [vmem:[#allocation5 + $0x8] sm:$0xff]
    %v182 = vld [vmem:[#allocation5 + $0x10] sm:$0xff]
    %v183 = vld [vmem:[#allocation5 + $0x18] sm:$0xff]
    %184 = vmatprep.subr.mxu0 0.0
    %185 = vmatpush1.msra.mxu0 %v127
    %186 = vmatprep.subr.mxu0 0.0
    %187 = vmatpush1.msra.mxu0 %v126
    %188 = vmatprep.subr.mxu0 0.0
    %189 = vmatpush1.msra.mxu0 %v125
    %190 = vmatprep.subr.mxu0 0.0
    %191 = vmatpush1.msra.mxu0 %v124
    %192 = vmatprep.subr.mxu0 0.0
    %193 = vmatpush1.msra.mxu0 %v123
    %194 = vmatprep.subr.mxu0 0.0
    %195 = vmatpush1.msra.mxu0 %v122
    %196 = vmatprep.subr.mxu0 0.0
    %197 = vmatpush1.msra.mxu0 %v121
    %198 = vmatprep.subr.mxu0 0.0
    %199 = vmatpush1.msra.mxu0 %v120
    %200 = vmatprep.subr.mxu0 0.0
    %201 = vmatpush1.msra.mxu0 %v119
    %202 = vmatprep.subr.mxu0 0.0
    %203 = vmatpush1.msra.mxu0 %v118
    %204 = vmatprep.subr.mxu0 0.0
    %205 = vmatpush1.msra.mxu0 %v117
    %206 = vmatprep.subr.mxu0 0.0
    %207 = vmatpush1.msra.mxu0 %v116
    %208 = vmatprep.subr.mxu0 0.0
    %209 = vmatpush1.msra.mxu0 %v115
    %210 = vmatprep.subr.mxu0 0.0
    %211 = vmatpush1.msra.mxu0 %v114
    %212 = vmatprep.subr.mxu0 0.0
    %213 = vmatpush1.msra.mxu0 %v113
    %214 = vmatprep.subr.mxu0 0.0
    %215 = vmatpush1.msra.mxu0 %v112
    %216 = vmatprep.subr.mxu0 0.0
    %217 = vmatpush2.msra.mxu0 0.0
    %218 = vmatprep.subr.mxu0 0.0
    %219 = vmatpush2.msra.mxu0 0.0
    %220 = vmatprep.subr.mxu0 0.0
    %221 = vmatpush2.msra.mxu0 0.0
    %222 = vmatprep.subr.mxu0 0.0
    %223 = vmatpush2.msra.mxu0 0.0
    %224 = vmatprep.subr.mxu0 0.0
    %225 = vmatpush2.msra.mxu0 0.0
    %226 = vmatprep.subr.mxu0 0.0
    %227 = vmatpush2.msra.mxu0 0.0
    %228 = vmatprep.subr.mxu0 0.0
    %229 = vmatpush2.msra.mxu0 0.0
    %230 = vmatprep.subr.mxu0 0.0
    %231 = vmatpush2.msra.mxu0 0.0
    %232 = vmatprep.subr.mxu0 0.0
    %233 = vmatpush2.msra.mxu0 0.0
    %234 = vmatprep.subr.mxu0 0.0
    %235 = vmatpush2.msra.mxu0 0.0
    %236 = vmatprep.subr.mxu0 0.0
    %237 = vmatpush2.msra.mxu0 0.0
    %238 = vmatprep.subr.mxu0 0.0
    %239 = vmatpush2.msra.mxu0 0.0
    %240 = vmatprep.subr.mxu0 0.0
    %241 = vmatpush2.msra.mxu0 0.0
    %242 = vmatprep.subr.mxu0 0.0
    %243 = vmatpush2.msra.mxu0 0.0
    %244 = vmatprep.subr.mxu0 0.0
    %245 = vmatpush2.msra.mxu0 0.0
    %246 = vmatprep.subr.mxu0 0.0
    %247 = vmatpush2.msra.mxu0 0.0
    %248 = vmatprep.mubr.f32.mxu0 0.0
    %249 = vmatmul.mubr.f32.gmra.mxu0 %v180
    %v250 = vpop.f32.mrf.mxu0
    %v251 = vadd.f32 0.0, %v250
    %v252 = vpop.f32.mrf.mxu0
    %253 = vmatprep.mubr.f32.mxu0 0.0
    %254 = vmatmul.mubr.f32.gmra.mxu0 %v181
    %v255 = vpop.f32.mrf.mxu0
    %v256 = vadd.f32 0.0, %v255
    %v257 = vpop.f32.mrf.mxu0
    %258 = vmatprep.mubr.f32.mxu0 0.0
    %259 = vmatmul.mubr.f32.gmra.mxu0 %v182
    %v260 = vpop.f32.mrf.mxu0
    %v261 = vadd.f32 0.0, %v260
    %v262 = vpop.f32.mrf.mxu0
    %263 = vmatprep.mubr.f32.mxu0 0.0
    %264 = vmatmul.mubr.f32.gmra.mxu0 %v183
    %v265 = vpop.f32.mrf.mxu0
    %v266 = vadd.f32 0.0, %v265
    %v267 = vpop.f32.mrf.mxu0
    %268 = vdwg.mxu0
    %v269 = vld [vmem:[#allocation7] sm:$0xff]
    %v270 = vld [vmem:[#allocation7 + $0x8] sm:$0xff]
    %v271 = vld [vmem:[#allocation7 + $0x10] sm:$0xff]
    %v272 = vld [vmem:[#allocation7 + $0x18] sm:$0xff]
    %273 = vmatprep.subr.mxu0 0.0
    %274 = vmatpush1.msra.mxu0 %v179
    %275 = vmatprep.subr.mxu0 0.0
    %276 = vmatpush1.msra.mxu0 %v178
    %277 = vmatprep.subr.mxu0 0.0
    %278 = vmatpush1.msra.mxu0 %v177
    %279 = vmatprep.subr.mxu0 0.0
    %280 = vmatpush1.msra.mxu0 %v176
    %281 = vmatprep.subr.mxu0 0.0
    %282 = vmatpush1.msra.mxu0 %v175
    %283 = vmatprep.subr.mxu0 0.0
    %284 = vmatpush1.msra.mxu0 %v174
    %285 = vmatprep.subr.mxu0 0.0
    %286 = vmatpush1.msra.mxu0 %v173
    %287 = vmatprep.subr.mxu0 0.0
    %288 = vmatpush1.msra.mxu0 %v172
    %289 = vmatprep.subr.mxu0 0.0
    %290 = vmatpush1.msra.mxu0 %v171
    %291 = vmatprep.subr.mxu0 0.0
    %292 = vmatpush1.msra.mxu0 %v170
    %293 = vmatprep.subr.mxu0 0.0
    %294 = vmatpush1.msra.mxu0 %v169
    %295 = vmatprep.subr.mxu0 0.0
    %296 = vmatpush1.msra.mxu0 %v168
    %297 = vmatprep.subr.mxu0 0.0
    %298 = vmatpush1.msra.mxu0 %v167
    %299 = vmatprep.subr.mxu0 0.0
    %300 = vmatpush1.msra.mxu0 %v166
    %301 = vmatprep.subr.mxu0 0.0
    %302 = vmatpush1.msra.mxu0 %v165
    %303 = vmatprep.subr.mxu0 0.0
    %304 = vmatpush1.msra.mxu0 %v164
    %305 = vmatprep.subr.mxu0 0.0
    %306 = vmatpush2.msra.mxu0 0.0
    %307 = vmatprep.subr.mxu0 0.0
    %308 = vmatpush2.msra.mxu0 0.0
    %309 = vmatprep.subr.mxu0 0.0
    %310 = vmatpush2.msra.mxu0 0.0
    %311 = vmatprep.subr.mxu0 0.0
    %312 = vmatpush2.msra.mxu0 0.0
    %313 = vmatprep.subr.mxu0 0.0
    %314 = vmatpush2.msra.mxu0 0.0
    %315 = vmatprep.subr.mxu0 0.0
    %316 = vmatpush2.msra.mxu0 0.0
    %317 = vmatprep.subr.mxu0 0.0
    %318 = vmatpush2.msra.mxu0 0.0
    %319 = vmatprep.subr.mxu0 0.0
    %320 = vmatpush2.msra.mxu0 0.0
    %321 = vmatprep.subr.mxu0 0.0
    %322 = vmatpush2.msra.mxu0 0.0
    %323 = vmatprep.subr.mxu0 0.0
    %324 = vmatpush2.msra.mxu0 0.0
    %325 = vmatprep.subr.mxu0 0.0
    %326 = vmatpush2.msra.mxu0 0.0
    %327 = vmatprep.subr.mxu0 0.0
    %328 = vmatpush2.msra.mxu0 0.0
    %329 = vmatprep.subr.mxu0 0.0
    %330 = vmatpush2.msra.mxu0 0.0
    %331 = vmatprep.subr.mxu0 0.0
    %332 = vmatpush2.msra.mxu0 0.0
    %333 = vmatprep.subr.mxu0 0.0
    %334 = vmatpush2.msra.mxu0 0.0
    %335 = vmatprep.subr.mxu0 0.0
    %336 = vmatpush2.msra.mxu0 0.0
    %337 = vmatprep.mubr.f32.mxu0 0.0
    %338 = vmatmul.mubr.f32.gmra.mxu0 %v269
    %v339 = vpop.f32.mrf.mxu0
    %v340 = vadd.f32 0.0, %v339
    %v341 = vpop.f32.mrf.mxu0
    %342 = vmatprep.mubr.f32.mxu0 0.0
    %343 = vmatmul.mubr.f32.gmra.mxu0 %v270
    %v344 = vpop.f32.mrf.mxu0
    %v345 = vadd.f32 0.0, %v344
    %v346 = vpop.f32.mrf.mxu0
    %347 = vmatprep.mubr.f32.mxu0 0.0
    %348 = vmatmul.mubr.f32.gmra.mxu0 %v271
    %v349 = vpop.f32.mrf.mxu0
    %v350 = vadd.f32 0.0, %v349
    %v351 = vpop.f32.mrf.mxu0
    %352 = vmatprep.mubr.f32.mxu0 0.0
    %353 = vmatmul.mubr.f32.gmra.mxu0 %v272
    %v354 = vpop.f32.mrf.mxu0
    %v355 = vadd.f32 0.0, %v354
    %v356 = vpop.f32.mrf.mxu0
    %357 = vdwg.mxu0
    %v358 = vmul.f32 %v251, %v340
    %v359 = vmul.f32 %v256, %v345
    %v360 = vmul.f32 %v261, %v350
    %v361 = vmul.f32 %v266, %v355
    %v362 = vadd.f32 %v358, %v359
    %v363 = vadd.f32 %v362, %v360
    %v364 = vadd.f32 %v363, %v361
    %v365 = vrot.slane %v364, 4
    %v366 = vadd.f32 %v364, %v365
    %v367 = vrot.slane %v366, 2
    %v368 = vadd.f32 %v366, %v367
    %v369 = vrot.slane %v368, 1
    %v370 = vadd.f32 %v368, %v369
    %371 = vst [vmem:[#allocation8] sm:$0x1] %v370
    // Predicated region
    $region30: #{tpu_custom_call.1} parent=1 // pred_check
      _
    $region31: #{tpu_custom_call.1} parent=1 // pred_check_branch
      %373 = sbr.rel (0) target = $region33
    $region32: #{tpu_custom_call.1} parent=1 // pred_region
      %s375 = ssub.s32 16, 16
      %376 = vsyncadd [#allocation4], %s375
      %s378 = sshll.u32 [#allocation8], 4
      %s379 = int_to_ptr.vmem [resolvable:$true] %s378
      %381 = dma.vmem_to_hbm [thread:$0]  %s379, 16, %s4, [#allocation4]
    $region33: #{tpu_custom_call.1} parent=1 // pred_fallthru
      _
    // Predicated region
    $region34: #{tpu_custom_call.1} parent=1 // pred_check
      _
    $region35: #{tpu_custom_call.1} parent=1 // pred_check_branch
      %383 = sbr.rel (0) target = $region37
    $region36: #{tpu_custom_call.1} parent=1 // pred_region
      %384 = dma.done [#allocation4], 16
    $region37: #{tpu_custom_call.1} parent=1 // pred_fallthru
      _
    %385 = vsyncpa [#allocation3], 1
    %386 = vsyncpa [#allocation6], 1
    %387 = vsyncpa [#allocation4], 1

</llo_original>
